<compile_context>
chip_gen: v6e
topology: v6e:2x2x1
jax: 0.10.0
libtpu: 0.0.40
codegen_flags: <defaults>
</compile_context>

<pallas_src>
import jax
import jax.numpy as jnp
from jax import lax
from jax.experimental import pallas as pl
from jax.experimental.pallas import tpu as pltpu

_LANE = 128


def _round_up(x, m):
    return ((x + m - 1) // m) * m


def epe_loss(pred_flow, gt_flow, *, target_block_bytes=2 << 20):
    """Pallas EPE loss. pred_flow, gt_flow: (N, C, H, W) float arrays."""
    assert pred_flow.shape == gt_flow.shape
    N, C, H, W = pred_flow.shape
    P = H * W
    itemsize = jnp.dtype(pred_flow.dtype).itemsize
    # dtype-aware sublane multiple: bf16 packs 16 rows/vreg, int8/fp8 pack 32.
    sub = {4: 8, 2: 16, 1: 32}.get(itemsize, 8)

    # Lane-dense spatial layout: (H*W) -> (rows, 128); C stays a leading axis
    # (flattening C=2 into the sublane slot would pad 2 -> 8 sublanes).
    p_pad = _round_up(P, _LANE)
    r_arr = p_pad // _LANE

    # --- row-tile selection (byte budget -> rows, multiple of `sub`) ---
    budget_rows = max(sub, (target_block_bytes // (C * _LANE * itemsize)) // sub * sub)
    tr = r_arr if r_arr <= budget_rows else budget_rows
    num_tiles = pl.cdiv(r_arr, tr)

    # Keep >= 4 grid steps when possible so both v7x TensorCores stay busy.
    MIN_STEPS = 4
    if N * num_tiles < MIN_STEPS and r_arr >= 2 * sub:
        want = min(pl.cdiv(MIN_STEPS, N), r_arr // sub)
        tr = _round_up(pl.cdiv(r_arr, want), sub)
        num_tiles = pl.cdiv(r_arr, tr)

    ragged = (num_tiles * tr != r_arr)   # last row-tile overhangs the array
    g = 8 if tr % 8 == 0 else tr         # rows of the per-tile partial block

    def _prep(x):
        x = x.reshape(N, C, P)
        if p_pad != P:
            # Rare path only (H*W not a multiple of 128): pad the tail with
            # zeros.  Identical zeros on both inputs -> diff 0 -> 0 EPE.
            # Typical flow shapes (e.g. 436x1024) never hit this, so the hot
            # path performs zero extra HBM copies.
            x = jnp.pad(x, ((0, 0), (0, 0), (0, p_pad - P)))
        return x.reshape(N, C, r_arr, _LANE)

    def kernel(pred_ref, gt_ref, out_ref):
        # pred_ref / gt_ref : VMEM (C, tr, 128) tiles (batch dim squeezed).
        d = pred_ref[...].astype(jnp.float32) - gt_ref[...].astype(jnp.float32)
        sq = jnp.sum(d * d, axis=0)        # (tr, 128): channel sum = vreg adds
        epe = jnp.sqrt(sq)                 # per-pixel EPE (EUP)
        if ragged:
            # Rows past the end of the array in the last tile hold garbage
            # (possibly NaN after sqrt); zero them BEFORE the reduction.
            t = pl.program_id(1)
            row = lax.broadcasted_iota(jnp.int32, (tr, _LANE), 0)
            epe = jnp.where(t * tr + row < r_arr, epe, 0.0)
        if tr % 8 == 0:
            # Collapse rows into one (8,128) block of partials: pure VPU vreg
            # adds (no cross-lane XLU reduce), unmasked lane-dense store.
            part = epe.reshape(tr // 8, 8, _LANE).sum(axis=0)
        else:
            part = epe                     # tiny single-tile case (tr == r_arr < 8)
        out_ref[...] = part

    pred_r = _prep(pred_flow)
    gt_r = _prep(gt_flow)

    in_spec = pl.BlockSpec((None, C, tr, _LANE), lambda n, t: (n, 0, t, 0))
    out_spec = pl.BlockSpec((None, None, g, _LANE), lambda n, t: (n, t, 0, 0))

    partials = pl.pallas_call(
        kernel,
        out_shape=jax.ShapeDtypeStruct((N, num_tiles, g, _LANE), jnp.float32),
        grid=(N, num_tiles),
        in_specs=[in_spec, in_spec],
        out_specs=out_spec,
        compiler_params=pltpu.CompilerParams(
            dimension_semantics=("parallel", "parallel")),
        cost_estimate=pl.CostEstimate(
            flops=4 * N * C * H * W,
            transcendentals=N * H * W,
            bytes_accessed=2 * N * C * H * W * itemsize
                           + N * num_tiles * g * _LANE * 4),
    )(pred_r, gt_r)

    # Final cross-tile reduction + mean in the wrapper (tiny, f32).
    return jnp.sum(partials) / jnp.float32(N * H * W)


def epe_loss_ref(pred_flow, gt_flow):
    """Plain-JAX reference (mirrors the PyTorch forward)."""
    d = pred_flow.astype(jnp.float32) - gt_flow.astype(jnp.float32)
    return jnp.mean(jnp.sqrt(jnp.sum(d * d, axis=1)))


if __name__ == "__main__":
    key = jax.random.PRNGKey(0)

    # 1) Optical-flow-like shapes: batch=2, 2 flow channels, 16x16 spatial.
    #    Zero-copy fast path (H*W multiple of 128), single row-tile per batch.
    k1, k2 = jax.random.split(key)
    pred = jax.random.normal(k1, (2, 2, 16, 16), dtype=jnp.float32)
    gt = jax.random.normal(k2, (2, 2, 16, 16), dtype=jnp.float32)
    out = jax.block_until_ready(epe_loss(pred, gt))
    ref = jax.block_until_ready(epe_loss_ref(pred, gt))
    assert jnp.allclose(out, ref, rtol=1e-5, atol=1e-5), (out, ref)

    # 2) Multi-tile grid with a ragged last row-tile (exercises the in-kernel
    #    masking path; small block budget forces several tiles).
    k3, k4 = jax.random.split(k1)
    pred2 = jax.random.normal(k3, (2, 2, 40, 64), dtype=jnp.float32)
    gt2 = jax.random.normal(k4, (2, 2, 40, 64), dtype=jnp.float32)
    out2 = jax.block_until_ready(epe_loss(pred2, gt2, target_block_bytes=8192))
    ref2 = jax.block_until_ready(epe_loss_ref(pred2, gt2))
    assert jnp.allclose(out2, ref2, rtol=1e-5, atol=1e-5), (out2, ref2)

    # 3) H*W not a multiple of 128 (rare minimal-pad path).
    k5, k6 = jax.random.split(k2)
    pred3 = jax.random.normal(k5, (1, 2, 10, 10), dtype=jnp.float32)
    gt3 = jax.random.normal(k6, (1, 2, 10, 10), dtype=jnp.float32)
    out3 = jax.block_until_ready(epe_loss(pred3, gt3))
    ref3 = jax.block_until_ready(epe_loss_ref(pred3, gt3))
    assert jnp.allclose(out3, ref3, rtol=1e-5, atol=1e-5), (out3, ref3)

    print("KERNEL_OK")
</pallas_src>

<mosaic_0001>
module attributes {stable_mosaic.version = 11 : i64} {
  func.func @kernel(%arg0: i32, %arg1: i32, %arg2: memref<1x2x2x128xf32, #tpu.memory_space<vmem>>, %arg3: memref<1x2x2x128xf32, #tpu.memory_space<vmem>>, %arg4: memref<1x1x2x128xf32, #tpu.memory_space<vmem>>) attributes {dimension_semantics = [#tpu.dimension_semantics<parallel>, #tpu.dimension_semantics<parallel>], iteration_bounds = array<i64: 2, 1>, scalar_prefetch = 0 : i64, scratch_operands = 0 : i64, tpu.core_type = #tpu.core_type<tc>, window_params = [{transform_indices = @transform_0, window_bounds = array<i64: 1, 2, 2, 128>}, {transform_indices = @transform_1, window_bounds = array<i64: 1, 2, 2, 128>}, {transform_indices = @transform_2, window_bounds = array<i64: 1, 1, 2, 128>}]} {
    %c0 = arith.constant 0 : index
    %c0_0 = arith.constant 0 : index
    %c0_1 = arith.constant 0 : index
    %c0_2 = arith.constant 0 : index
    %0 = vector.load %arg2[%c0, %c0_0, %c0_1, %c0_2] : memref<1x2x2x128xf32, #tpu.memory_space<vmem>>, vector<1x2x2x128xf32>
    %1 = vector.shape_cast %0 : vector<1x2x2x128xf32> to vector<2x2x128xf32>
    %c0_3 = arith.constant 0 : index
    %c0_4 = arith.constant 0 : index
    %c0_5 = arith.constant 0 : index
    %c0_6 = arith.constant 0 : index
    %2 = vector.load %arg3[%c0_3, %c0_4, %c0_5, %c0_6] : memref<1x2x2x128xf32, #tpu.memory_space<vmem>>, vector<1x2x2x128xf32>
    %3 = vector.shape_cast %2 : vector<1x2x2x128xf32> to vector<2x2x128xf32>
    %4 = arith.subf %1, %3 : vector<2x2x128xf32>
    %5 = arith.mulf %4, %4 : vector<2x2x128xf32>
    %cst = arith.constant dense<0.000000e+00> : vector<2x128xf32>
    %6 = vector.multi_reduction <add>, %5, %cst [0] : vector<2x2x128xf32> to vector<2x128xf32>
    %7 = math.sqrt %6 : vector<2x128xf32>
    %c0_7 = arith.constant 0 : index
    %c0_8 = arith.constant 0 : index
    %c0_9 = arith.constant 0 : index
    %c0_10 = arith.constant 0 : index
    %8 = vector.load %arg4[%c0_7, %c0_8, %c0_9, %c0_10] : memref<1x1x2x128xf32, #tpu.memory_space<vmem>>, vector<1x1x2x128xf32>
    %9 = vector.shape_cast %8 : vector<1x1x2x128xf32> to vector<2x128xf32>
    %10 = vector.shape_cast %7 : vector<2x128xf32> to vector<1x1x2x128xf32>
    tpu.vector_store %arg4[%c0_7, %c0_8, %c0_9, %c0_10], %10 {strides = array<i32>} : memref<1x1x2x128xf32, #tpu.memory_space<vmem>>, vector<1x1x2x128xf32>,
    return
  }
  func.func @transform_0(%arg0: i32, %arg1: i32) -> (i32, i32, i32, i32) {
    %c0_i32 = arith.constant 0 : i32
    %c0_i32_0 = arith.constant 0 : i32
    %c0_i32_1 = arith.constant 0 : i32
    return %arg0, %c0_i32, %arg1, %c0_i32_0 : i32, i32, i32, i32
  }
  func.func @transform_1(%arg0: i32, %arg1: i32) -> (i32, i32, i32, i32) {
    %c0_i32 = arith.constant 0 : i32
    %c0_i32_0 = arith.constant 0 : i32
    %c0_i32_1 = arith.constant 0 : i32
    return %arg0, %c0_i32, %arg1, %c0_i32_0 : i32, i32, i32, i32
  }
  func.func @transform_2(%arg0: i32, %arg1: i32) -> (i32, i32, i32, i32) {
    %c0_i32 = arith.constant 0 : i32
    %c0_i32_0 = arith.constant 0 : i32
    %c0_i32_1 = arith.constant 0 : i32
    return %arg0, %arg1, %c0_i32, %c0_i32_0 : i32, i32, i32, i32
  }
}

</mosaic_0001>

<llo_original>
// kernel: tpu_custom_call.1
$region0: #{tpu_custom_call.1}
  #allocation0 [shape = 'u32[]', space=smem, size = 0x4, offset = 0x4, fixed_abs, tag = 'smem constant byte address 0x4 - core index']
  #allocation1 [shape = 'u32[144,128]{1,0:T(1,128)}', space=vmem, size = 0x12000, scoped, tag = 'internal scratch']
  %s0 = inlined_call_operand.hbm [shape: f32[2,2,2,128], index: 0, kind: input, shape index: {}]
  %s1 = inlined_call_operand.hbm [shape: f32[2,2,2,128], index: 1, kind: input, shape index: {}]
  %s2 = inlined_call_operand.hbm [shape: f32[2,1,2,128], index: 2, kind: output, shape index: {}]
  %s3 = sld [smem:[#allocation0]]
  $region49: #{tpu_custom_call.1} parent=0
    _
  %s5 = ssub.s32 1, %s3
  %s6 = scalar_select 0, %s5, %s3
  $region1: #{tpu_custom_call.1} parent=0
    #allocation2 [shape = 'u8[4096]{0}', space=vmem, size = 0x1000, scoped, tag = 'input window, operand 0']
    #allocation3 [shape = 's32[2]{0}', space=sflag, size = 0x8, scoped, tag = 'scoped memory for tpu_custom_call.1']
    #allocation4 [shape = 's32[2]{0}', space=sflag, size = 0x8, scoped, tag = 'scoped memory for tpu_custom_call.1']
    #allocation5 [shape = 'u8[4096]{0}', space=vmem, size = 0x1000, scoped, tag = 'input window, operand 1']
    #allocation6 [shape = 's32[2]{0}', space=sflag, size = 0x8, scoped, tag = 'scoped memory for tpu_custom_call.1']
    #allocation7 [shape = 'u8[2048]{0}', space=vmem, size = 0x800, scoped, tag = 'output window, operand 0']
    %7 = vsyncpa [#allocation3], 0
    %s8 = scalar_lea.sflag [#allocation3], 1
    %9 = vsyncpa %s8, 0
    %10 = vsyncpa [#allocation6], 0
    %s11 = scalar_lea.sflag [#allocation6], 1
    %12 = vsyncpa %s11, 0
    %13 = vsyncpa [#allocation4], 0
    %s14 = scalar_lea.sflag [#allocation4], 1
    %15 = vsyncpa %s14, 0
    loop: start=0, step=1, limit=4
    $region2: #{tpu_custom_call.1} parent=1 // loop_pre_header
      _
    $region3: #{tpu_custom_call.1} parent=1 // loop_header
      %s17 = sphi 0, %s21
      %p18 = scmp.ge.s32.totalorder %s17, 4
      %s24 = sphi 0, %s36
      %s25 = sphi 0, %s32
      %s26 = sphi 0, %s24
      %s27 = sphi 0, %s25
      %s28 = sphi 0, %s26
      %s29 = sphi 0, %s27
      %s41 = sphi 0, %s43
      %s44 = sphi 0, %s41
      %s45 = sphi 0, %s44
      %s61 = sphi 0, %s45
      %s69 = sphi 0, %s71
      %s72 = sphi 0, %s69
      %s73 = sphi 0, %s72
      %s89 = sphi 0, %s73
      %s97 = sphi 0, %s99
      %s100 = sphi 0, %s97
      %s101 = sphi 0, %s100
      %s117 = sphi 0, %s101
    $region4: #{tpu_custom_call.1} parent=1 // loop_header_branch
      %20 = sbr.rel (%p18) target = $region8
    $region5: #{tpu_custom_call.1} parent=1 // loop_body
      %s22 = ssub.s32 %s17, 1
      %s23 = ssub.s32 %s17, 2
      %s30 = sadd.s32 1, %s25
      %p31 = scmp.ge.s32.totalorder %s30, 1
      %s32 = scalar_select %p31, 0, %s30
      %s33 = sadd.s32 1, %s24
      %s34 = scalar_select %p31, %s33, %s24
      %p35 = scmp.ge.s32.totalorder %s34, 2
      %s36 = scalar_select %p35, 0, %s34
      %s37 = ssub.s32 %s24, %s36
      %s38 = ssub.s32 %s25, %s32
      %s39 = sor.u32 %s37, %s38
      %p40 = scmp.eq.s32.totalorder %s39, 0
      %s42 = sadd.s32 %s41, 1
      %s43 = scalar_select %p40, %s41, %s42
      %p46 = pneg %p40
      %p47 = scmp.eq.s32.totalorder %s17, 1
      %p48 = por %p46, %p47
      %p49 = scmp.ne.s32.totalorder %s41, %s44
      %p50 = scmp.eq.s32.totalorder %s17, 0
      %p51 = por %p49, %p50
      %p52 = scmp.ne.s32.totalorder %s41, %s44
      %p53 = scmp.eq.s32.totalorder %s22, 1
      %p54 = por %p52, %p53
      %p55 = scmp.ne.s32.totalorder %s44, %s45
      %p56 = scmp.eq.s32.totalorder %s22, 0
      %p57 = por %p55, %p56
      %p58 = scmp.ne.s32.totalorder %s44, %s45
      %p59 = scmp.eq.s32.totalorder %s23, 1
      %p60 = por %p58, %p59
      %p62 = scmp.ne.s32.totalorder %s45, %s61
      %p63 = scmp.eq.s32.totalorder %s23, 0
      %p64 = por %p62, %p63
      %s65 = ssub.s32 %s24, %s36
      %s66 = ssub.s32 %s25, %s32
      %s67 = sor.u32 %s65, %s66
      %p68 = scmp.eq.s32.totalorder %s67, 0
      %s70 = sadd.s32 %s69, 1
      %s71 = scalar_select %p68, %s69, %s70
      %p74 = pneg %p68
      %p75 = scmp.eq.s32.totalorder %s17, 1
      %p76 = por %p74, %p75
      %p77 = scmp.ne.s32.totalorder %s69, %s72
      %p78 = scmp.eq.s32.totalorder %s17, 0
      %p79 = por %p77, %p78
      %p80 = scmp.ne.s32.totalorder %s69, %s72
      %p81 = scmp.eq.s32.totalorder %s22, 1
      %p82 = por %p80, %p81
      %p83 = scmp.ne.s32.totalorder %s72, %s73
      %p84 = scmp.eq.s32.totalorder %s22, 0
      %p85 = por %p83, %p84
      %p86 = scmp.ne.s32.totalorder %s72, %s73
      %p87 = scmp.eq.s32.totalorder %s23, 1
      %p88 = por %p86, %p87
      %p90 = scmp.ne.s32.totalorder %s73, %s89
      %p91 = scmp.eq.s32.totalorder %s23, 0
      %p92 = por %p90, %p91
      %s93 = ssub.s32 %s24, %s36
      %s94 = ssub.s32 %s25, %s32
      %s95 = sor.u32 %s93, %s94
      %p96 = scmp.eq.s32.totalorder %s95, 0
      %s98 = sadd.s32 %s97, 1
      %s99 = scalar_select %p96, %s97, %s98
      %p102 = pneg %p96
      %p103 = scmp.eq.s32.totalorder %s17, 1
      %p104 = por %p102, %p103
      %p105 = scmp.ne.s32.totalorder %s97, %s100
      %p106 = scmp.eq.s32.totalorder %s17, 0
      %p107 = por %p105, %p106
      %p108 = scmp.ne.s32.totalorder %s97, %s100
      %p109 = scmp.eq.s32.totalorder %s22, 1
      %p110 = por %p108, %p109
      %p111 = scmp.ne.s32.totalorder %s100, %s101
      %p112 = scmp.eq.s32.totalorder %s22, 0
      %p113 = por %p111, %p112
      %p114 = scmp.ne.s32.totalorder %s100, %s101
      %p115 = scmp.eq.s32.totalorder %s23, 1
      %p116 = por %p114, %p115
      %p118 = scmp.ne.s32.totalorder %s101, %s117
      %p119 = scmp.eq.s32.totalorder %s23, 0
      %p120 = por %p118, %p119
      %p121 = scmp.le.s32.totalorder 1, %s17
      %p122 = scmp.lt.s32.totalorder %s17, 3
      %p123 = pnand %p121, %p122
      %p124 = pneg %p123
      // Predicated region
      $region9: #{tpu_custom_call.1} parent=5 // pred_check
        _
      $region10: #{tpu_custom_call.1} parent=5 // pred_check_branch
        %126 = sbr.rel (%p123) target = $region12
      $region11: #{tpu_custom_call.1} parent=5 // pred_region
        %s127 = ssub.s32 %s17, 1
      $region12: #{tpu_custom_call.1} parent=5 // pred_fallthru
        _
      %p128 = scmp.lt.s32.totalorder %s17, 2
      // Predicated region
      $region13: #{tpu_custom_call.1} parent=5 // pred_check
        %p129 = pneg %p128
      $region14: #{tpu_custom_call.1} parent=5 // pred_check_branch
        %131 = sbr.rel (%p129) target = $region16
      $region15: #{tpu_custom_call.1} parent=5 // pred_region
        // Predicated region
        $region17: #{tpu_custom_call.1} parent=15 // pred_check
          %p132 = pneg %p51
        $region18: #{tpu_custom_call.1} parent=15 // pred_check_branch
          %134 = sbr.rel (%p132) target = $region20
        $region19: #{tpu_custom_call.1} parent=15 // pred_region
          %s135 = sand.u32 %s41, 1
          %s136 = scalar_lea.sflag [#allocation3], %s135
          %s137 = sand.u32 %s41, 1
          %s138 = smul.addr %s137, 4
          %s139 = scalar_lea.vmem [#allocation2], %s138
          %s141 = ssub.s32 64, 64
          %142 = vsyncadd %s136, %s141
          %s143 = smul.addr %s24, 2
          %s144 = sadd.s32 %s25, %s143
          %s145 = smul.addr %s144, 32
          %s146 = scalar_lea.hbm %s0, %s145
          %s147 = sshll.u32 %s139, 4
          %s148 = int_to_ptr.vmem [resolvable:$true] %s147
          %153 = dma.hbm_to_vmem [thread:$0]  %s146, 64, %s148, %s136, 32, 32, 2
        $region20: #{tpu_custom_call.1} parent=15 // pred_fallthru
          _
        // Predicated region
        $region21: #{tpu_custom_call.1} parent=15 // pred_check
          %p154 = pneg %p79
        $region22: #{tpu_custom_call.1} parent=15 // pred_check_branch
          %156 = sbr.rel (%p154) target = $region24
        $region23: #{tpu_custom_call.1} parent=15 // pred_region
          %s157 = sand.u32 %s69, 1
          %s158 = scalar_lea.sflag [#allocation6], %s157
          %s159 = sand.u32 %s69, 1
          %s160 = smul.addr %s159, 4
          %s161 = scalar_lea.vmem [#allocation5], %s160
          %s163 = ssub.s32 64, 64
          %164 = vsyncadd %s158, %s163
          %s165 = smul.addr %s24, 2
          %s166 = sadd.s32 %s25, %s165
          %s167 = smul.addr %s166, 32
          %s168 = scalar_lea.hbm %s1, %s167
          %s169 = sshll.u32 %s161, 4
          %s170 = int_to_ptr.vmem [resolvable:$true] %s169
          %175 = dma.hbm_to_vmem [thread:$0]  %s168, 64, %s170, %s158, 32, 32, 2
        $region24: #{tpu_custom_call.1} parent=15 // pred_fallthru
          _
      $region16: #{tpu_custom_call.1} parent=5 // pred_fallthru
        _
      %p176 = scmp.le.s32.totalorder 1, %s17
      %p177 = scmp.lt.s32.totalorder %s17, 3
      %p178 = pnand %p176, %p177
      %p179 = pneg %p178
      // Predicated region
      $region25: #{tpu_custom_call.1} parent=5 // pred_check
        _
      $region26: #{tpu_custom_call.1} parent=5 // pred_check_branch
        %181 = sbr.rel (%p178) target = $region28
      $region27: #{tpu_custom_call.1} parent=5 // pred_region
        %s182 = ssub.s32 %s17, 1
        %s183 = sand.u32 %s44, 1
        %s184 = scalar_lea.sflag [#allocation3], %s183
        %s185 = sand.u32 %s44, 1
        %s186 = smul.addr %s185, 4
        %s187 = scalar_lea.vmem [#allocation2], %s186
        // Predicated region
        $region29: #{tpu_custom_call.1} parent=27 // pred_check
          %p188 = pneg %p57
        $region30: #{tpu_custom_call.1} parent=27 // pred_check_branch
          %190 = sbr.rel (%p188) target = $region32
        $region31: #{tpu_custom_call.1} parent=27 // pred_region
          %191 = dma.done %s184, 64
        $region32: #{tpu_custom_call.1} parent=27 // pred_fallthru
          _
        %s192 = sand.u32 %s72, 1
        %s193 = scalar_lea.sflag [#allocation6], %s192
        %s194 = sand.u32 %s72, 1
        %s195 = smul.addr %s194, 4
        %s196 = scalar_lea.vmem [#allocation5], %s195
        // Predicated region
        $region33: #{tpu_custom_call.1} parent=27 // pred_check
          %p197 = pneg %p85
        $region34: #{tpu_custom_call.1} parent=27 // pred_check_branch
          %199 = sbr.rel (%p197) target = $region36
        $region35: #{tpu_custom_call.1} parent=27 // pred_region
          %200 = dma.done %s193, 64
        $region36: #{tpu_custom_call.1} parent=27 // pred_fallthru
          _
        %s201 = sand.u32 %s44, 1
        %s202 = scalar_lea.sflag [#allocation3], %s201
        %s203 = sand.u32 %s44, 1
        %s204 = smul.addr %s203, 4
        %s205 = scalar_lea.vmem [#allocation2], %s204
        %p206 = pneg %p57
        %p207 = pneg %p54
        %s208 = sand.u32 %s72, 1
        %s209 = scalar_lea.sflag [#allocation6], %s208
        %s210 = sand.u32 %s72, 1
        %s211 = smul.addr %s210, 4
        %s212 = scalar_lea.vmem [#allocation5], %s211
        %p213 = pneg %p85
        %p214 = pneg %p82
        %p215 = pneg %p113
        %p216 = pneg %p110
        %s217 = sand.u32 %s100, 1
        %s218 = scalar_lea.sflag [#allocation4], %s217
        %s219 = sand.u32 %s100, 1
        %s220 = smul.addr %s219, 2
        %s221 = scalar_lea.vmem [#allocation7], %s220
        %v222 = vld [vmem:[%s187] sm:$0x3]
        %v223 = vld [vmem:[%s187 + $0x2] sm:$0x3]
        %v224 = vld [vmem:[%s196] sm:$0x3]
        %v225 = vld [vmem:[%s196 + $0x2] sm:$0x3]
        %v226 = vsub.f32 %v222, %v224
        %v227 = vsub.f32 %v223, %v225
        %v228 = vmul.f32 %v226, %v226
        %v229 = vmul.f32 %v227, %v227
        %vm230 = vcmask 1041408
        %v231 = vsel %vm230, %v228, 0.0
        %v232 = vsel %vm230, %v229, 0.0
        %v233 = vadd.f32 %v231, %v232
        %v234 = vrsqrt.pop %v233
        %v235 = vmul.f32 %v233, %v234
        %vm236 = vcmp.eq.f32.partialorder %v233, inf
        %v237 = vsel %vm236, %v233, %v235
        %vm238 = vcmp.eq.f32.partialorder %v233, 0.0
        %v239 = vand.u32 %v233, 2147483648
        %v240 = vsel %vm238, %v239, %v237
        %241 = vst [vmem:[%s221] sm:$0x3] %v240
        %s242 = sand.u32 %s100, 1
        %s243 = scalar_lea.sflag [#allocation4], %s242
        %s244 = sand.u32 %s100, 1
        %s245 = smul.addr %s244, 2
        %s246 = scalar_lea.vmem [#allocation7], %s245
        // Predicated region
        $region37: #{tpu_custom_call.1} parent=27 // pred_check
          %p247 = pneg %p110
        $region38: #{tpu_custom_call.1} parent=27 // pred_check_branch
          %249 = sbr.rel (%p247) target = $region40
        $region39: #{tpu_custom_call.1} parent=27 // pred_region
          %s251 = ssub.s32 32, 32
          %252 = vsyncadd %s243, %s251
          %s253 = sadd.s32 %s27, %s26
          %s254 = smul.addr %s253, 32
          %s255 = scalar_lea.hbm %s2, %s254
          %s257 = sshll.u32 %s246, 4
          %s258 = int_to_ptr.vmem [resolvable:$true] %s257
          %260 = dma.vmem_to_hbm [thread:$0]  %s258, 32, %s255, %s243
        $region40: #{tpu_custom_call.1} parent=27 // pred_fallthru
          _
      $region28: #{tpu_custom_call.1} parent=5 // pred_fallthru
        _
      %p261 = scmp.le.s32.totalorder 2, %s17
      // Predicated region
      $region41: #{tpu_custom_call.1} parent=5 // pred_check
        %p262 = pneg %p261
      $region42: #{tpu_custom_call.1} parent=5 // pred_check_branch
        %264 = sbr.rel (%p262) target = $region44
      $region43: #{tpu_custom_call.1} parent=5 // pred_region
        %s265 = ssub.s32 %s17, 2
        // Predicated region
        $region45: #{tpu_custom_call.1} parent=43 // pred_check
          %p266 = pneg %p116
        $region46: #{tpu_custom_call.1} parent=43 // pred_check_branch
          %268 = sbr.rel (%p266) target = $region48
        $region47: #{tpu_custom_call.1} parent=43 // pred_region
          %s269 = sand.u32 %s101, 1
          %s270 = scalar_lea.sflag [#allocation4], %s269
          %s271 = sand.u32 %s101, 1
          %s272 = smul.addr %s271, 2
          %s273 = scalar_lea.vmem [#allocation7], %s272
          %274 = dma.done %s270, 32
        $region48: #{tpu_custom_call.1} parent=43 // pred_fallthru
          _
      $region44: #{tpu_custom_call.1} parent=5 // pred_fallthru
        _
    $region6: #{tpu_custom_call.1} parent=1 // loop_footer
      %s21 = sadd.s32 1, %s17
    $region7: #{tpu_custom_call.1} parent=1 // loop_footer_branch
      %16 = sbr.rel target = $region3
    $region8: #{tpu_custom_call.1} parent=1 // loop_exit
      _
    %275 = vsyncpa [#allocation3], 1
    %s276 = scalar_lea.sflag [#allocation3], 1
    %277 = vsyncpa %s276, 1
    %278 = vsyncpa [#allocation6], 1
    %s279 = scalar_lea.sflag [#allocation6], 1
    %280 = vsyncpa %s279, 1
    %281 = vsyncpa [#allocation4], 1
    %s282 = scalar_lea.sflag [#allocation4], 1
    %283 = vsyncpa %s282, 1

</llo_original>
